<compile_context>
chip_gen: v6e
topology: v6e:2x2x1
jax: 0.10.0
libtpu: 0.0.40
codegen_flags: <defaults>
</compile_context>

<pallas_src>
import jax
import jax.numpy as jnp
from jax.experimental import pallas as pl
from jax.experimental.pallas import tpu as pltpu


def _round_up(x, m):
    return (x + m - 1) // m * m


def _continue_predictor_kernel(x_ref, w1_ref, b1_ref, w2_ref, b2_ref,
                               wo_ref, bo_ref, o_ref):
    # Layer 1: single (TILE_B, in_dim) @ (in_dim, H) MXU push, f32 accumulation.
    x = x_ref[...]
    h = jnp.dot(x, w1_ref[...], preferred_element_type=jnp.float32)
    h = h + b1_ref[...].astype(jnp.float32)
    h = h * jax.nn.sigmoid(h)                                   # SiLU (f32, EUP)

    # Layer 2: (TILE_B, H) @ (H, H).
    h = jnp.dot(h.astype(w2_ref.dtype), w2_ref[...],
                preferred_element_type=jnp.float32)
    h = h + b2_ref[...].astype(jnp.float32)
    h = h * jax.nn.sigmoid(h)                                   # SiLU (f32)

    # Output layer (H -> 1): a matmul with N=1 would waste the MXU, so use a
    # VPU multiply with the wo row + XLU cross-lane reduce instead.
    logit = jnp.sum(h * wo_ref[...].astype(jnp.float32), axis=-1, keepdims=True)
    logit = logit + bo_ref[0, 0]                                # scalar bias from SMEM
    o_ref[...] = jax.nn.sigmoid(logit).astype(o_ref.dtype)


def continue_predictor(hidden, state, params, *, tile_b=None):
    """hidden: (B, hidden_dim), state: (B, state_dim) -> (B, 1) float32."""
    B = hidden.shape[0]
    in_dim, hidden_dim = params["w1"].shape
    dtype = params["w1"].dtype
    itemsize = jnp.dtype(dtype).itemsize

    # Fold the feature-axis concat outside the kernel: layer 1 becomes one
    # K=(hidden_dim+state_dim) matmul and no lane-axis concat is needed in VMEM.
    x = jnp.concatenate([hidden.astype(dtype), state.astype(dtype)], axis=-1)

    # Batch tile: multiple of 8 sublanes; large enough to pipeline, capped so
    # double-buffered tiles + resident weights fit a 64 MiB VMEM budget (v7x).
    if tile_b is None:
        tile_b = min(512, _round_up(B, 8))
    b_pad = _round_up(B, tile_b)
    if b_pad != B:
        x = jnp.pad(x, ((0, b_pad - B), (0, 0)))   # remainder guard: pad + slice

    grid = (b_pad // tile_b,)

    weight_bytes = (params["w1"].size + params["b1"].size + params["w2"].size
                    + params["b2"].size + params["wo"].size) * itemsize
    tile_bytes = 2 * tile_b * (in_dim * itemsize + 4)          # 2x-buffered x tile + f32 out tile
    vmem_limit = int(min(max(2 * (weight_bytes + tile_bytes), 16 << 20), 64 << 20))

    cost = pl.CostEstimate(
        flops=2 * b_pad * (in_dim * hidden_dim + hidden_dim * hidden_dim + hidden_dim),
        transcendentals=b_pad * (2 * hidden_dim + 1),
        bytes_accessed=int(x.size * itemsize + weight_bytes + b_pad * 4),
    )

    out = pl.pallas_call(
        _continue_predictor_kernel,
        out_shape=jax.ShapeDtypeStruct((b_pad, 1), jnp.float32),
        grid=grid,
        in_specs=[
            pl.BlockSpec((tile_b, in_dim), lambda i: (i, 0)),           # x  (streamed)
            pl.BlockSpec((in_dim, hidden_dim), lambda i: (0, 0)),       # w1 (VMEM-resident)
            pl.BlockSpec((1, hidden_dim), lambda i: (0, 0)),            # b1
            pl.BlockSpec((hidden_dim, hidden_dim), lambda i: (0, 0)),   # w2
            pl.BlockSpec((1, hidden_dim), lambda i: (0, 0)),            # b2
            pl.BlockSpec((1, hidden_dim), lambda i: (0, 0)),            # wo row
            pl.BlockSpec(memory_space=pltpu.MemorySpace.SMEM),          # bo scalar
        ],
        out_specs=pl.BlockSpec((tile_b, 1), lambda i: (i, 0)),
        compiler_params=pltpu.CompilerParams(
            dimension_semantics=("parallel",),     # megacore sharding on v7x
            vmem_limit_bytes=vmem_limit,
        ),
        cost_estimate=cost,
    )(x, params["w1"], params["b1"], params["w2"], params["b2"],
      params["wo"], params["bo"])

    return out[:B]


def init_params(key, hidden_dim, state_dim, dtype=jnp.float32):
    """PyTorch-Linear-style init U(-1/sqrt(fan_in), 1/sqrt(fan_in)).

    Weights stored (in_features, out_features) for `x @ W`; wo is kept as a
    (1, hidden_dim) row (== torch weight layout for Linear(hidden_dim, 1));
    bo is a (1, 1) f32 scalar that lives in SMEM inside the kernel.
    Use dtype=jnp.bfloat16 on v6e/v7x to halve streaming traffic (loosen
    numerical tolerances accordingly).
    """
    in1 = hidden_dim + state_dim
    ks = jax.random.split(key, 6)

    def u(k, shape, fan_in):
        bound = float(1.0 / (fan_in ** 0.5))
        return jax.random.uniform(k, shape, jnp.float32, -bound, bound)

    return {
        "w1": u(ks[0], (in1, hidden_dim), in1).astype(dtype),
        "b1": u(ks[1], (1, hidden_dim), in1).astype(dtype),
        "w2": u(ks[2], (hidden_dim, hidden_dim), hidden_dim).astype(dtype),
        "b2": u(ks[3], (1, hidden_dim), hidden_dim).astype(dtype),
        "wo": u(ks[4], (1, hidden_dim), hidden_dim).astype(dtype),
        "bo": u(ks[5], (1, 1), hidden_dim).astype(jnp.float32),  # SMEM scalar, f32
    }


def _reference(hidden, state, p):
    f32 = jnp.float32
    x = jnp.concatenate([hidden, state], axis=-1).astype(f32)
    x = jax.nn.silu(x @ p["w1"].astype(f32) + p["b1"].astype(f32))
    x = jax.nn.silu(x @ p["w2"].astype(f32) + p["b2"].astype(f32))
    return jax.nn.sigmoid(x @ p["wo"].astype(f32).T + p["bo"])


if __name__ == "__main__":
    hidden_dim, state_dim, batch = 32, 32, 10   # batch not a multiple of 8 -> exercises padding

    key = jax.random.PRNGKey(0)
    k_h, k_s, k_p = jax.random.split(key, 3)
    hidden = jax.random.normal(k_h, (batch, hidden_dim), jnp.float32)
    state = jax.random.normal(k_s, (batch, state_dim), jnp.float32)
    params = init_params(k_p, hidden_dim, state_dim, dtype=jnp.float32)

    out = continue_predictor(hidden, state, params)
    out = jax.block_until_ready(out)

    ref = _reference(hidden, state, params)
    assert out.shape == (batch, 1)
    assert jnp.allclose(out, ref, atol=1e-5, rtol=1e-5)

    print("KERNEL_OK")
</pallas_src>

<mosaic_0001>
module attributes {stable_mosaic.version = 11 : i64} {
  func.func @_continue_predictor_kernel(%arg0: i32, %arg1: memref<16x64xf32, #tpu.memory_space<vmem>>, %arg2: memref<64x32xf32, #tpu.memory_space<vmem>>, %arg3: memref<1x32xf32, #tpu.memory_space<vmem>>, %arg4: memref<32x32xf32, #tpu.memory_space<vmem>>, %arg5: memref<1x32xf32, #tpu.memory_space<vmem>>, %arg6: memref<1x32xf32, #tpu.memory_space<vmem>>, %arg7: memref<1x1xf32, #tpu.memory_space<smem>>, %arg8: memref<16x1xf32, #tpu.memory_space<vmem>>) attributes {dimension_semantics = [#tpu.dimension_semantics<parallel>], iteration_bounds = array<i64: 1>, scalar_prefetch = 0 : i64, scratch_operands = 0 : i64, tpu.core_type = #tpu.core_type<tc>, window_params = [{transform_indices = @transform_0, window_bounds = array<i64: 16, 64>}, {pipeline_mode = #tpu.pipeline_mode<synchronous>, transform_indices = @transform_1, window_bounds = array<i64: 64, 32>}, {pipeline_mode = #tpu.pipeline_mode<synchronous>, transform_indices = @transform_2, window_bounds = array<i64: 1, 32>}, {pipeline_mode = #tpu.pipeline_mode<synchronous>, transform_indices = @transform_3, window_bounds = array<i64: 32, 32>}, {pipeline_mode = #tpu.pipeline_mode<synchronous>, transform_indices = @transform_4, window_bounds = array<i64: 1, 32>}, {pipeline_mode = #tpu.pipeline_mode<synchronous>, transform_indices = @transform_5, window_bounds = array<i64: 1, 32>}, {transform_indices = @transform_6, window_bounds = array<i64: 1, 1>}, {transform_indices = @transform_7, window_bounds = array<i64: 16, 1>}]} {
    %c0 = arith.constant 0 : index
    %c0_0 = arith.constant 0 : index
    %0 = vector.load %arg1[%c0, %c0_0] : memref<16x64xf32, #tpu.memory_space<vmem>>, vector<16x64xf32>
    %c0_1 = arith.constant 0 : index
    %c0_2 = arith.constant 0 : index
    %1 = vector.load %arg2[%c0_1, %c0_2] : memref<64x32xf32, #tpu.memory_space<vmem>>, vector<64x32xf32>
    %cst = arith.constant dense<0.000000e+00> : vector<16x32xf32>
    %2 = tpu.matmul %0, %1, %cst {dimension_numbers = #tpu.dot_dimension_numbers<[1], [0], [0], [1], [0, 0, 1, 1], [], []>} : vector<16x64xf32>, vector<64x32xf32>, vector<16x32xf32> -> vector<16x32xf32>
    %c0_3 = arith.constant 0 : index
    %c0_4 = arith.constant 0 : index
    %3 = vector.load %arg3[%c0_3, %c0_4] : memref<1x32xf32, #tpu.memory_space<vmem>>, vector<1x32xf32>
    %4 = vector.broadcast %3 : vector<1x32xf32> to vector<16x32xf32>
    %5 = arith.addf %2, %4 : vector<16x32xf32>
    %6 = arith.negf %5 : vector<16x32xf32>
    %7 = math.exp %6 : vector<16x32xf32>
    %cst_5 = arith.constant 1.000000e+00 : f32
    %8 = vector.broadcast %cst_5 : f32 to vector<16x32xf32>
    %9 = arith.addf %8, %7 : vector<16x32xf32>
    %10 = arith.divf %8, %9 : vector<16x32xf32>
    %11 = arith.mulf %5, %10 : vector<16x32xf32>
    %c0_6 = arith.constant 0 : index
    %c0_7 = arith.constant 0 : index
    %12 = vector.load %arg4[%c0_6, %c0_7] : memref<32x32xf32, #tpu.memory_space<vmem>>, vector<32x32xf32>
    %cst_8 = arith.constant dense<0.000000e+00> : vector<16x32xf32>
    %13 = tpu.matmul %11, %12, %cst_8 {dimension_numbers = #tpu.dot_dimension_numbers<[1], [0], [0], [1], [0, 0, 1, 1], [], []>} : vector<16x32xf32>, vector<32x32xf32>, vector<16x32xf32> -> vector<16x32xf32>
    %c0_9 = arith.constant 0 : index
    %c0_10 = arith.constant 0 : index
    %14 = vector.load %arg5[%c0_9, %c0_10] : memref<1x32xf32, #tpu.memory_space<vmem>>, vector<1x32xf32>
    %15 = vector.broadcast %14 : vector<1x32xf32> to vector<16x32xf32>
    %16 = arith.addf %13, %15 : vector<16x32xf32>
    %17 = arith.negf %16 : vector<16x32xf32>
    %18 = math.exp %17 : vector<16x32xf32>
    %cst_11 = arith.constant 1.000000e+00 : f32
    %19 = vector.broadcast %cst_11 : f32 to vector<16x32xf32>
    %20 = arith.addf %19, %18 : vector<16x32xf32>
    %21 = arith.divf %19, %20 : vector<16x32xf32>
    %22 = arith.mulf %16, %21 : vector<16x32xf32>
    %c0_12 = arith.constant 0 : index
    %c0_13 = arith.constant 0 : index
    %23 = vector.load %arg6[%c0_12, %c0_13] : memref<1x32xf32, #tpu.memory_space<vmem>>, vector<1x32xf32>
    %24 = vector.broadcast %23 : vector<1x32xf32> to vector<16x32xf32>
    %25 = arith.mulf %22, %24 : vector<16x32xf32>
    %cst_14 = arith.constant dense<0.000000e+00> : vector<16xf32>
    %26 = vector.multi_reduction <add>, %25, %cst_14 [1] : vector<16x32xf32> to vector<16xf32>
    %27 = vector.shape_cast %26 : vector<16xf32> to vector<16x1xf32>
    %c0_15 = arith.constant 0 : index
    %c0_16 = arith.constant 0 : index
    %28 = memref.load %arg7[%c0_15, %c0_16] : memref<1x1xf32, #tpu.memory_space<smem>>
    %29 = vector.broadcast %28 : f32 to vector<16x1xf32>
    %30 = arith.addf %27, %29 : vector<16x1xf32>
    %31 = arith.negf %30 : vector<16x1xf32>
    %32 = math.exp %31 : vector<16x1xf32>
    %cst_17 = arith.constant 1.000000e+00 : f32
    %33 = vector.broadcast %cst_17 : f32 to vector<16x1xf32>
    %34 = arith.addf %33, %32 : vector<16x1xf32>
    %35 = arith.divf %33, %34 : vector<16x1xf32>
    %c0_18 = arith.constant 0 : index
    %c0_19 = arith.constant 0 : index
    %36 = vector.load %arg8[%c0_18, %c0_19] : memref<16x1xf32, #tpu.memory_space<vmem>>, vector<16x1xf32>
    tpu.vector_store %arg8[%c0_18, %c0_19], %35 {strides = array<i32>} : memref<16x1xf32, #tpu.memory_space<vmem>>, vector<16x1xf32>,
    return
  }
  func.func @transform_0(%arg0: i32) -> (i32, i32) {
    %c0_i32 = arith.constant 0 : i32
    %c0_i32_0 = arith.constant 0 : i32
    return %arg0, %c0_i32 : i32, i32
  }
  func.func @transform_1(%arg0: i32) -> (i32, i32) {
    %c0_i32 = arith.constant 0 : i32
    %c0_i32_0 = arith.constant 0 : i32
    %c0_i32_1 = arith.constant 0 : i32
    return %c0_i32, %c0_i32_0 : i32, i32
  }
  func.func @transform_2(%arg0: i32) -> (i32, i32) {
    %c0_i32 = arith.constant 0 : i32
    %c0_i32_0 = arith.constant 0 : i32
    %c0_i32_1 = arith.constant 0 : i32
    return %c0_i32, %c0_i32_0 : i32, i32
  }
  func.func @transform_3(%arg0: i32) -> (i32, i32) {
    %c0_i32 = arith.constant 0 : i32
    %c0_i32_0 = arith.constant 0 : i32
    %c0_i32_1 = arith.constant 0 : i32
    return %c0_i32, %c0_i32_0 : i32, i32
  }
  func.func @transform_4(%arg0: i32) -> (i32, i32) {
    %c0_i32 = arith.constant 0 : i32
    %c0_i32_0 = arith.constant 0 : i32
    %c0_i32_1 = arith.constant 0 : i32
    return %c0_i32, %c0_i32_0 : i32, i32
  }
  func.func @transform_5(%arg0: i32) -> (i32, i32) {
    %c0_i32 = arith.constant 0 : i32
    %c0_i32_0 = arith.constant 0 : i32
    %c0_i32_1 = arith.constant 0 : i32
    return %c0_i32, %c0_i32_0 : i32, i32
  }
  func.func @transform_6(%arg0: i32) -> (i32, i32) {
    %c0_i32 = arith.constant 0 : i32
    %c0_i32_0 = arith.constant 0 : i32
    %c0_i32_1 = arith.constant 0 : i32
    return %c0_i32, %c0_i32_0 : i32, i32
  }
  func.func @transform_7(%arg0: i32) -> (i32, i32) {
    %c0_i32 = arith.constant 0 : i32
    %c0_i32_0 = arith.constant 0 : i32
    return %arg0, %c0_i32 : i32, i32
  }
}

</mosaic_0001>

<llo_original>
// kernel: tpu_custom_call.1
$region0: #{tpu_custom_call.1}
  #allocation0 [shape = 'u32[]', space=smem, size = 0x4, offset = 0x4, fixed_abs, tag = 'smem constant byte address 0x4 - core index']
  #allocation1 [shape = 'u32[144,128]{1,0:T(1,128)}', space=vmem, size = 0x12000, scoped, tag = 'internal scratch']
  #allocation2 [shape = 'f32[1,1]{1,0:T(1,128)S(6)}', space=smem, size = 0x200, scoped, tag = 'scoped memory for tpu_custom_call.1']
  %s0 = inlined_call_operand.vmem [shape: f32[16,64], index: 0, kind: input, shape index: {}]
  %s1 = inlined_call_operand.vmem [shape: f32[64,32], index: 1, kind: input, shape index: {}]
  %s2 = inlined_call_operand.vmem [shape: f32[1,32], index: 2, kind: input, shape index: {}]
  %s3 = inlined_call_operand.vmem [shape: f32[32,32], index: 3, kind: input, shape index: {}]
  %s4 = inlined_call_operand.vmem [shape: f32[1,32], index: 4, kind: input, shape index: {}]
  %s5 = inlined_call_operand.vmem [shape: f32[1,32], index: 5, kind: input, shape index: {}]
  %s6 = inlined_call_operand.<no memory space> [shape: f32[1,1], index: 6, kind: input, shape index: {}]
  %s7 = inlined_call_operand.vmem [shape: f32[16,1], index: 7, kind: output, shape index: {}]
  %s8 = sld [smem:[#allocation0]]
  $region38: #{tpu_custom_call.1} parent=0
    _
  %s10 = ssub.s32 1, %s8
  %s11 = scalar_select 0, %s10, %s8
  %12 = sst [smem:[#allocation2]] %s6
  // Predicated region
  $region2: #{tpu_custom_call.1} parent=0 // pred_check
    _
  $region3: #{tpu_custom_call.1} parent=0 // pred_check_branch
    %14 = sbr.rel (0) target = $region5
  $region4: #{tpu_custom_call.1} parent=0 // pred_region
    _
  $region5: #{tpu_custom_call.1} parent=0 // pred_fallthru
    _
  // Predicated region
  $region6: #{tpu_custom_call.1} parent=0 // pred_check
    _
  $region7: #{tpu_custom_call.1} parent=0 // pred_check_branch
    %16 = sbr.rel (0) target = $region9
  $region8: #{tpu_custom_call.1} parent=0 // pred_region
    _
  $region9: #{tpu_custom_call.1} parent=0 // pred_fallthru
    _
  // Predicated region
  $region10: #{tpu_custom_call.1} parent=0 // pred_check
    _
  $region11: #{tpu_custom_call.1} parent=0 // pred_check_branch
    %18 = sbr.rel (0) target = $region13
  $region12: #{tpu_custom_call.1} parent=0 // pred_region
    _
  $region13: #{tpu_custom_call.1} parent=0 // pred_fallthru
    _
  // Predicated region
  $region14: #{tpu_custom_call.1} parent=0 // pred_check
    _
  $region15: #{tpu_custom_call.1} parent=0 // pred_check_branch
    %20 = sbr.rel (0) target = $region17
  $region16: #{tpu_custom_call.1} parent=0 // pred_region
    _
  $region17: #{tpu_custom_call.1} parent=0 // pred_fallthru
    _
  // Predicated region
  $region18: #{tpu_custom_call.1} parent=0 // pred_check
    _
  $region19: #{tpu_custom_call.1} parent=0 // pred_check_branch
    %22 = sbr.rel (0) target = $region21
  $region20: #{tpu_custom_call.1} parent=0 // pred_region
    _
  $region21: #{tpu_custom_call.1} parent=0 // pred_fallthru
    _
  // Predicated region
  $region22: #{tpu_custom_call.1} parent=0 // pred_check
    _
  $region23: #{tpu_custom_call.1} parent=0 // pred_check_branch
    %24 = sbr.rel (0) target = $region25
  $region24: #{tpu_custom_call.1} parent=0 // pred_region
    _
  $region25: #{tpu_custom_call.1} parent=0 // pred_fallthru
    _
  // Predicated region
  $region26: #{tpu_custom_call.1} parent=0 // pred_check
    _
  $region27: #{tpu_custom_call.1} parent=0 // pred_check_branch
    %26 = sbr.rel (0) target = $region29
  $region28: #{tpu_custom_call.1} parent=0 // pred_region
    _
  $region29: #{tpu_custom_call.1} parent=0 // pred_fallthru
    _
  %v27 = vld [vmem:[%s0] sm:$0xff]
  %v28 = vld [vmem:[%s0 + $0x8] sm:$0xff]
  %v29 = vld [vmem:[%s1] sm:$0xff]
  %v30 = vld [vmem:[%s1 + $0x8] sm:$0xff]
  %v31 = vld [vmem:[%s1 + $0x10] sm:$0xff]
  %v32 = vld [vmem:[%s1 + $0x18] sm:$0xff]
  %v33 = vld [vmem:[%s1 + $0x20] sm:$0xff]
  %v34 = vld [vmem:[%s1 + $0x28] sm:$0xff]
  %v35 = vld [vmem:[%s1 + $0x30] sm:$0xff]
  %v36 = vld [vmem:[%s1 + $0x38] sm:$0xff]
  %v37 = vld [vmem:[%s2] sm:$0x1]
  %v39 = vlaneseq
  %v40 = vshrl.u32 %v39, 7
  %v41 = vsub.s32 0, %v40
  %v42 = vrot.slane %v37, %v41
  %vm44 = vcmask 523264
  %v46 = vsel %vm44, %v27, 0
  %v49 = vsel %vm44, %v28, 0
  %51 = vmatprep.subr.mxu0 0.0
  %52 = vmatpush1.msra.mxu0 0.0
  %53 = vmatprep.subr.mxu0 0.0
  %54 = vmatpush1.msra.mxu0 0.0
  %55 = vmatprep.subr.mxu0 0.0
  %56 = vmatpush1.msra.mxu0 0.0
  %57 = vmatprep.subr.mxu0 0.0
  %58 = vmatpush1.msra.mxu0 0.0
  %59 = vmatprep.subr.mxu0 0.0
  %60 = vmatpush1.msra.mxu0 0.0
  %61 = vmatprep.subr.mxu0 0.0
  %62 = vmatpush1.msra.mxu0 0.0
  %63 = vmatprep.subr.mxu0 0.0
  %64 = vmatpush1.msra.mxu0 0.0
  %65 = vmatprep.subr.mxu0 0.0
  %66 = vmatpush1.msra.mxu0 0.0
  %67 = vmatprep.subr.mxu0 0.0
  %68 = vmatpush1.msra.mxu0 %v36
  %69 = vmatprep.subr.mxu0 0.0
  %70 = vmatpush1.msra.mxu0 %v35
  %71 = vmatprep.subr.mxu0 0.0
  %72 = vmatpush1.msra.mxu0 %v34
  %73 = vmatprep.subr.mxu0 0.0
  %74 = vmatpush1.msra.mxu0 %v33
  %75 = vmatprep.subr.mxu0 0.0
  %76 = vmatpush1.msra.mxu0 %v32
  %77 = vmatprep.subr.mxu0 0.0
  %78 = vmatpush1.msra.mxu0 %v31
  %79 = vmatprep.subr.mxu0 0.0
  %80 = vmatpush1.msra.mxu0 %v30
  %81 = vmatprep.subr.mxu0 0.0
  %82 = vmatpush1.msra.mxu0 %v29
  %83 = vmatprep.subr.mxu0 0.0
  %84 = vmatpush2.msra.mxu0 0.0
  %85 = vmatprep.subr.mxu0 0.0
  %86 = vmatpush2.msra.mxu0 0.0
  %87 = vmatprep.subr.mxu0 0.0
  %88 = vmatpush2.msra.mxu0 0.0
  %89 = vmatprep.subr.mxu0 0.0
  %90 = vmatpush2.msra.mxu0 0.0
  %91 = vmatprep.subr.mxu0 0.0
  %92 = vmatpush2.msra.mxu0 0.0
  %93 = vmatprep.subr.mxu0 0.0
  %94 = vmatpush2.msra.mxu0 0.0
  %95 = vmatprep.subr.mxu0 0.0
  %96 = vmatpush2.msra.mxu0 0.0
  %97 = vmatprep.subr.mxu0 0.0
  %98 = vmatpush2.msra.mxu0 0.0
  %99 = vmatprep.subr.mxu0 0.0
  %100 = vmatpush2.msra.mxu0 0.0
  %101 = vmatprep.subr.mxu0 0.0
  %102 = vmatpush2.msra.mxu0 0.0
  %103 = vmatprep.subr.mxu0 0.0
  %104 = vmatpush2.msra.mxu0 0.0
  %105 = vmatprep.subr.mxu0 0.0
  %106 = vmatpush2.msra.mxu0 0.0
  %107 = vmatprep.subr.mxu0 0.0
  %108 = vmatpush2.msra.mxu0 0.0
  %109 = vmatprep.subr.mxu0 0.0
  %110 = vmatpush2.msra.mxu0 0.0
  %111 = vmatprep.subr.mxu0 0.0
  %112 = vmatpush2.msra.mxu0 0.0
  %113 = vmatprep.subr.mxu0 0.0
  %114 = vmatpush2.msra.mxu0 0.0
  %115 = vmatprep.mubr.f32.mxu0 0.0
  %116 = vmatmul.mubr.f32.gmra.mxu0 %v46
  %v117 = vpop.f32.mrf.mxu0
  %v118 = vadd.f32 %v42, %v117
  %v119 = vpop.f32.mrf.mxu0
  %120 = vmatprep.mubr.f32.mxu0 0.0
  %121 = vmatmul.mubr.f32.gmra.mxu0 %v49
  %v122 = vpop.f32.mrf.mxu0
  %v123 = vadd.f32 %v42, %v122
  %v124 = vpop.f32.mrf.mxu0
  %125 = vdwg.mxu0
  %v126 = vxor.u32 %v118, 2147483648
  %v127 = vxor.u32 %v123, 2147483648
  %v128 = vmul.f32 %v126, 1.442695
  %v129 = vpow.pop %v128
  %v130 = vmul.f32 %v127, 1.442695
  %v131 = vpow.pop %v130
  %v132 = vadd.f32 %v129, 1.0
  %v133 = vadd.f32 %v131, 1.0
  %v134 = vrcp.pop %v132
  %v135 = vmul.f32 1.0, %v134
  %v136 = vrcp.pop %v133
  %v137 = vmul.f32 1.0, %v136
  %v138 = vmul.f32 %v118, %v135
  %v139 = vmul.f32 %v123, %v137
  %v140 = vld [vmem:[%s3] sm:$0xff]
  %v141 = vld [vmem:[%s3 + $0x8] sm:$0xff]
  %v142 = vld [vmem:[%s3 + $0x10] sm:$0xff]
  %v143 = vld [vmem:[%s3 + $0x18] sm:$0xff]
  %v144 = vld [vmem:[%s4] sm:$0x1]
  %v146 = vlaneseq
  %v147 = vshrl.u32 %v146, 7
  %v148 = vsub.s32 0, %v147
  %v149 = vrot.slane %v144, %v148
  %vm151 = vcmask 261120
  %v153 = vsel %vm151, %v138, 0
  %v156 = vsel %vm151, %v139, 0
  %158 = vmatprep.subr.mxu0 0.0
  %159 = vmatpush1.msra.mxu0 0.0
  %160 = vmatprep.subr.mxu0 0.0
  %161 = vmatpush1.msra.mxu0 0.0
  %162 = vmatprep.subr.mxu0 0.0
  %163 = vmatpush1.msra.mxu0 0.0
  %164 = vmatprep.subr.mxu0 0.0
  %165 = vmatpush1.msra.mxu0 0.0
  %166 = vmatprep.subr.mxu0 0.0
  %167 = vmatpush1.msra.mxu0 0.0
  %168 = vmatprep.subr.mxu0 0.0
  %169 = vmatpush1.msra.mxu0 0.0
  %170 = vmatprep.subr.mxu0 0.0
  %171 = vmatpush1.msra.mxu0 0.0
  %172 = vmatprep.subr.mxu0 0.0
  %173 = vmatpush1.msra.mxu0 0.0
  %174 = vmatprep.subr.mxu0 0.0
  %175 = vmatpush1.msra.mxu0 0.0
  %176 = vmatprep.subr.mxu0 0.0
  %177 = vmatpush1.msra.mxu0 0.0
  %178 = vmatprep.subr.mxu0 0.0
  %179 = vmatpush1.msra.mxu0 0.0
  %180 = vmatprep.subr.mxu0 0.0
  %181 = vmatpush1.msra.mxu0 0.0
  %182 = vmatprep.subr.mxu0 0.0
  %183 = vmatpush1.msra.mxu0 %v143
  %184 = vmatprep.subr.mxu0 0.0
  %185 = vmatpush1.msra.mxu0 %v142
  %186 = vmatprep.subr.mxu0 0.0
  %187 = vmatpush1.msra.mxu0 %v141
  %188 = vmatprep.subr.mxu0 0.0
  %189 = vmatpush1.msra.mxu0 %v140
  %190 = vmatprep.subr.mxu0 0.0
  %191 = vmatpush2.msra.mxu0 0.0
  %192 = vmatprep.subr.mxu0 0.0
  %193 = vmatpush2.msra.mxu0 0.0
  %194 = vmatprep.subr.mxu0 0.0
  %195 = vmatpush2.msra.mxu0 0.0
  %196 = vmatprep.subr.mxu0 0.0
  %197 = vmatpush2.msra.mxu0 0.0
  %198 = vmatprep.subr.mxu0 0.0
  %199 = vmatpush2.msra.mxu0 0.0
  %200 = vmatprep.subr.mxu0 0.0
  %201 = vmatpush2.msra.mxu0 0.0
  %202 = vmatprep.subr.mxu0 0.0
  %203 = vmatpush2.msra.mxu0 0.0
  %204 = vmatprep.subr.mxu0 0.0
  %205 = vmatpush2.msra.mxu0 0.0
  %206 = vmatprep.subr.mxu0 0.0
  %207 = vmatpush2.msra.mxu0 0.0
  %208 = vmatprep.subr.mxu0 0.0
  %209 = vmatpush2.msra.mxu0 0.0
  %210 = vmatprep.subr.mxu0 0.0
  %211 = vmatpush2.msra.mxu0 0.0
  %212 = vmatprep.subr.mxu0 0.0
  %213 = vmatpush2.msra.mxu0 0.0
  %214 = vmatprep.subr.mxu0 0.0
  %215 = vmatpush2.msra.mxu0 0.0
  %216 = vmatprep.subr.mxu0 0.0
  %217 = vmatpush2.msra.mxu0 0.0
  %218 = vmatprep.subr.mxu0 0.0
  %219 = vmatpush2.msra.mxu0 0.0
  %220 = vmatprep.subr.mxu0 0.0
  %221 = vmatpush2.msra.mxu0 0.0
  %222 = vmatprep.mubr.f32.mxu0 0.0
  %223 = vmatmul.mubr.f32.gmra.mxu0 %v153
  %v224 = vpop.f32.mrf.mxu0
  %v225 = vadd.f32 %v149, %v224
  %v226 = vpop.f32.mrf.mxu0
  %227 = vmatprep.mubr.f32.mxu0 0.0
  %228 = vmatmul.mubr.f32.gmra.mxu0 %v156
  %v229 = vpop.f32.mrf.mxu0
  %v230 = vadd.f32 %v149, %v229
  %v231 = vpop.f32.mrf.mxu0
  %232 = vdwg.mxu0
  %v233 = vxor.u32 %v225, 2147483648
  %v234 = vxor.u32 %v230, 2147483648
  %v235 = vmul.f32 %v233, 1.442695
  %v236 = vpow.pop %v235
  %v237 = vmul.f32 %v234, 1.442695
  %v238 = vpow.pop %v237
  %v239 = vadd.f32 %v236, 1.0
  %v240 = vadd.f32 %v238, 1.0
  %v241 = vrcp.pop %v239
  %v242 = vmul.f32 1.0, %v241
  %v243 = vrcp.pop %v240
  %v244 = vmul.f32 1.0, %v243
  %v245 = vmul.f32 %v225, %v242
  %v246 = vmul.f32 %v230, %v244
  %v247 = vld [vmem:[%s5] sm:$0x1]
  %v249 = vlaneseq
  %v250 = vshrl.u32 %v249, 7
  %v251 = vsub.s32 0, %v250
  %v252 = vrot.slane %v247, %v251
  %v254 = vmul.f32 %v245, %v252
  %v255 = vmul.f32 %v246, %v252
  %v256 = vsel %vm151, %v254, 0.0
  %257 = vadd.xlane.f32.xlu0 %v256
  %v258 = vpop.xlane.xlu0 %257
  %v259 = vsel %vm151, %v255, 0.0
  %260 = vadd.xlane.f32.xlu0 %v259
  %v261 = vpop.xlane.xlu0 %260
  %s262 = sld [smem:[#allocation2]]
  %v263 = vstv %s262
  %v264 = vadd.f32 %v258, %v263
  %v265 = vadd.f32 %v261, %v263
  %v266 = vxor.u32 %v264, 2147483648
  %v267 = vxor.u32 %v265, 2147483648
  %v268 = vmul.f32 %v266, 1.442695
  %v269 = vpow.pop %v268
  %v270 = vmul.f32 %v267, 1.442695
  %v271 = vpow.pop %v270
  %v272 = vadd.f32 %v269, 1.0
  %v273 = vadd.f32 %v271, 1.0
  %v274 = vrcp.pop %v272
  %v275 = vmul.f32 1.0, %v274
  %v276 = vrcp.pop %v273
  %v277 = vmul.f32 1.0, %v276
  %vm278 = vcmask 7168
  %279 = vst.msk [vmem:[%s7] sm:$0xff] %vm278, %v275
  %280 = vst.msk [vmem:[%s7 + $0x8] sm:$0xff] %vm278, %v277
  // Predicated region
  $region30: #{tpu_custom_call.1} parent=0 // pred_check
    _
  $region31: #{tpu_custom_call.1} parent=0 // pred_check_branch
    %282 = sbr.rel (0) target = $region33
  $region32: #{tpu_custom_call.1} parent=0 // pred_region
    _
  $region33: #{tpu_custom_call.1} parent=0 // pred_fallthru
    _
  // Predicated region
  $region34: #{tpu_custom_call.1} parent=0 // pred_check
    _
  $region35: #{tpu_custom_call.1} parent=0 // pred_check_branch
    %284 = sbr.rel (0) target = $region37
  $region36: #{tpu_custom_call.1} parent=0 // pred_region
    _
  $region37: #{tpu_custom_call.1} parent=0 // pred_fallthru
    _

</llo_original>
